<compile_context>
chip_gen: v7x
topology: tpu7x:2x2x1
jax: 0.10.0
libtpu: 0.0.40
codegen_flags: <defaults>
</compile_context>

<pallas_src>
import functools

import numpy as np
import jax
import jax.numpy as jnp
from jax.experimental import pallas as pl
from jax.experimental.pallas import tpu as pltpu


def _round_up(n, m):
    return ((n + m - 1) // m) * m


def classification_kernel(scalars_ref,      # SMEM (4,): [b2_0, b2_1, a_emb, a_cls]
                          x_ref,            # (TM, TK)      streamed input tile
                          w1_ref,           # (TK, H_PAD)   K-tile of embedding Linear(D, hidden)
                          b1_ref,           # (1, H_PAD)
                          w2t_ref,          # (2, H_PAD)    w2 transposed, zero-padded
                          fcw_ref,          # (2, N_PAD)    fc1 weight rows, zero-padded
                          fcb_ref,          # (1, N_PAD)    fc1 bias, -1e30 in padded cols
                          out_ref,          # (TM, N_PAD)
                          acc_ref):         # (TM, H_PAD) f32 accumulator scratch
    k = pl.program_id(1)

    @pl.when(k == 0)
    def _():
        acc_ref[...] = jnp.zeros_like(acc_ref)

    # embedding_net Linear(D, hidden): MXU, f32 accumulation across K tiles.
    acc_ref[...] += jnp.dot(x_ref[...], w1_ref[...],
                            preferred_element_type=jnp.float32)

    @pl.when(k == pl.num_programs(1) - 1)
    def _():
        h = acc_ref[...] + b1_ref[...]

        # embedding_net PReLU (padded hidden columns are exactly 0 -> stay 0).
        a_emb = scalars_ref[2]
        h = jnp.where(h >= 0.0, h, a_emb * h)

        # embedding_net Linear(hidden, 2): VPU mul + XLU lane reduction (N=2 stays off the MXU).
        e0 = jnp.sum(h * w2t_ref[0:1, :], axis=-1, keepdims=True) + scalars_ref[0]  # (TM, 1)
        e1 = jnp.sum(h * w2t_ref[1:2, :], axis=-1, keepdims=True) + scalars_ref[1]  # (TM, 1)

        # ClassificationNet.nonlinear = nn.PReLU()
        a_cls = scalars_ref[3]
        e0 = jnp.where(e0 >= 0.0, e0, a_cls * e0)
        e1 = jnp.where(e1 >= 0.0, e1, a_cls * e1)

        # fc1 = Linear(2, n_classes) as two rank-1 broadcasts on the VPU (K=2 off the MXU).
        # Padded logit columns get -1e30 from the padded bias -> exp underflows to 0.
        logits = e0 * fcw_ref[0:1, :] + e1 * fcw_ref[1:2, :] + fcb_ref[...]          # (TM, N_PAD)

        # Numerically stable log_softmax over the lane-aligned 128-wide tile.
        m = jnp.max(logits, axis=-1, keepdims=True)
        z = logits - m
        lse = jnp.log(jnp.sum(jnp.exp(z), axis=-1, keepdims=True))
        out_ref[...] = (z - lse).astype(out_ref.dtype)


@functools.partial(jax.jit, static_argnames=("block_b", "block_k", "out_dtype"))
def classification_net_forward(x, params, *, block_b=1024, block_k=None,
                               out_dtype=jnp.float32):
    """x: (B, ...) batch in float32 or bfloat16 (bf16 is used as-is -> 2x less HBM traffic).
    Returns log-probabilities (B, n_classes) in out_dtype."""
    w1, b1, w2, b2, fcw, fcb, a_emb, a_cls = params
    B = x.shape[0]
    x_flat = x.reshape(B, -1)                      # row-major flatten == torch .view (no copy pass)
    if x_flat.dtype == jnp.bfloat16:
        compute_dtype = jnp.bfloat16               # caller-provided bf16 stream, no wrapper cast
    else:
        compute_dtype = jnp.float32
        x_flat = x_flat.astype(jnp.float32)        # no-op when already f32

    D = x_flat.shape[1]
    hidden = w1.shape[1]
    n_classes = fcw.shape[1]
    assert w1.shape[0] == D, "embedding_net input width mismatch"

    H_PAD = _round_up(hidden, 128)                 # lane-align the hidden activation
    N_PAD = _round_up(n_classes, 128)              # lane-dense output stores
    NEG = jnp.float32(-1e30)

    x_bytes = np.dtype(compute_dtype).itemsize
    o_bytes = np.dtype(out_dtype).itemsize

    def footprint(tm, tk):                         # double-buffered VMEM footprint estimate
        return (2 * tm * tk * x_bytes              # x tiles
                + 2 * tk * H_PAD * x_bytes         # w1 K-tiles
                + tm * H_PAD * 4                   # f32 accumulator scratch
                + 2 * tm * N_PAD * o_bytes         # output tiles
                + 2 * (3 * H_PAD + 3 * N_PAD) * 4) # small resident vectors

    VMEM_BUDGET = 40 << 20                         # stay well under v7x's 64 MiB physical VMEM

    # Batch tile: multiple of 16 (safe sublane for f32 and bf16); cap at ceil(B/2) so the
    # batch grid has >= 2 steps for megacore (v7x).  For small B, one full-dim block.
    tm = min(_round_up(max(block_b, 16), 16), _round_up((B + 1) // 2, 16))
    if tm >= B:
        tm = B

    # K tile: must divide D exactly (no garbage contributions to the accumulator).
    if block_k is not None:
        if D % block_k != 0:
            raise ValueError(f"block_k={block_k} must divide D={D}")
        tk = block_k
    else:
        cands = [D] + [t for t in (4096, 2048, 1024, 512, 256, 128)
                       if t < D and D % t == 0]
        tk = next((c for c in cands if footprint(tm, c) <= VMEM_BUDGET), cands[-1])
    while footprint(tm, tk) > VMEM_BUDGET and tm > 16:
        tm = max(16, _round_up(tm // 2, 16))

    grid_b = -(-B // tm)                           # ragged last tile -> masked boundary block
    grid_k = D // tk

    # Pack / pad weights into the kernel layout (small, one-time).
    w1_pad = jnp.zeros((D, H_PAD), compute_dtype).at[:, :hidden].set(w1.astype(compute_dtype))
    b1_pad = jnp.zeros((1, H_PAD), jnp.float32).at[0, :hidden].set(b1)
    w2t_pad = jnp.zeros((2, H_PAD), jnp.float32).at[:, :hidden].set(w2.T)
    fcw_pad = jnp.zeros((2, N_PAD), jnp.float32).at[:, :n_classes].set(fcw)
    fcb_pad = jnp.full((1, N_PAD), NEG, jnp.float32).at[0, :n_classes].set(fcb)
    scalars = jnp.stack([jnp.asarray(b2[0], jnp.float32),
                         jnp.asarray(b2[1], jnp.float32),
                         jnp.asarray(a_emb, jnp.float32).reshape(()),
                         jnp.asarray(a_cls, jnp.float32).reshape(())])

    grid_spec = pltpu.PrefetchScalarGridSpec(
        num_scalar_prefetch=1,
        grid=(grid_b, grid_k),
        in_specs=[
            pl.BlockSpec((tm, tk), lambda i, k, s: (i, k)),        # x: streamed per (i, k)
            pl.BlockSpec((tk, H_PAD), lambda i, k, s: (k, 0)),     # w1 K-tile
            pl.BlockSpec((1, H_PAD), lambda i, k, s: (0, 0)),      # b1 (VMEM-resident)
            pl.BlockSpec((2, H_PAD), lambda i, k, s: (0, 0)),      # w2^T
            pl.BlockSpec((2, N_PAD), lambda i, k, s: (0, 0)),      # fc1 weight rows
            pl.BlockSpec((1, N_PAD), lambda i, k, s: (0, 0)),      # fc1 bias (-1e30 padded)
        ],
        out_specs=pl.BlockSpec((tm, N_PAD), lambda i, k, s: (i, 0)),
        scratch_shapes=[pltpu.VMEM((tm, H_PAD), jnp.float32)],
    )

    vmem_limit = int(min(max(footprint(tm, tk) + (8 << 20), 32 << 20), 60 << 20))

    out = pl.pallas_call(
        classification_kernel,
        out_shape=jax.ShapeDtypeStruct((B, N_PAD), out_dtype),
        grid_spec=grid_spec,
        compiler_params=pltpu.CompilerParams(
            dimension_semantics=("parallel", "arbitrary"),
            vmem_limit_bytes=vmem_limit,
        ),
    )(scalars, x_flat, w1_pad, b1_pad, w2t_pad, fcw_pad, fcb_pad)

    return out[:, :n_classes]


def init_params(key, in_features, hidden, n_classes):
    """Deterministic synthetic parameters (PyTorch-like, stored as x @ W layouts)."""
    ks = jax.random.split(key, 6)
    s = 0.1
    w1 = s * jax.random.normal(ks[0], (in_features, hidden), jnp.float32)
    b1 = s * jax.random.normal(ks[1], (hidden,), jnp.float32)
    w2 = s * jax.random.normal(ks[2], (hidden, 2), jnp.float32)
    b2 = s * jax.random.normal(ks[3], (2,), jnp.float32)
    fcw = s * jax.random.normal(ks[4], (2, n_classes), jnp.float32)
    fcb = s * jax.random.normal(ks[5], (n_classes,), jnp.float32)
    a_emb = jnp.asarray(0.25, jnp.float32)   # nn.PReLU() default init
    a_cls = jnp.asarray(0.25, jnp.float32)
    return (w1, b1, w2, b2, fcw, fcb, a_emb, a_cls)


def reference_forward(x, params):
    """Pure-JAX reference mirroring the PyTorch forward."""
    w1, b1, w2, b2, fcw, fcb, a_emb, a_cls = params
    xf = x.reshape(x.shape[0], -1)
    h = xf @ w1 + b1
    h = jnp.where(h >= 0, h, a_emb * h)
    e = h @ w2 + b2
    e = jnp.where(e >= 0, e, a_cls * e)
    logits = e @ fcw + fcb
    return jax.nn.log_softmax(logits, axis=-1)


if __name__ == "__main__":
    B, C, H, W = 2, 4, 16, 16
    n_classes = 10
    hidden = 32
    in_features = C * H * W

    key = jax.random.PRNGKey(0)
    kx, kp, kx2, kx3 = jax.random.split(key, 4)
    params = init_params(kp, in_features, hidden, n_classes)

    # 1) Small-batch path: single full-dim batch block, no K split.
    x = jax.random.normal(kx, (B, C, H, W), jnp.float32)
    out = jax.block_until_ready(classification_net_forward(x, params))
    ref = reference_forward(x, params)
    assert out.shape == (B, n_classes)
    assert jnp.allclose(out, ref, atol=1e-5, rtol=1e-5), "f32 path mismatch"

    # 2) Ragged batch tile + K-split accumulator path (grid = (2, 4), last batch block masked).
    x2 = jax.random.normal(kx2, (24, C, H, W), jnp.float32)
    out2 = jax.block_until_ready(
        classification_net_forward(x2, params, block_b=16, block_k=256))
    ref2 = reference_forward(x2, params)
    assert out2.shape == (24, n_classes)
    assert jnp.allclose(out2, ref2, atol=1e-4, rtol=1e-4), "ragged/K-split path mismatch"

    # 3) Caller-provided bf16 input stream (no wrapper-side cast pass over x).
    x3 = jax.random.normal(kx3, (16, C, H, W), jnp.float32).astype(jnp.bfloat16)
    out3 = jax.block_until_ready(classification_net_forward(x3, params))
    w1, b1, w2, b2, fcw, fcb, a_emb, a_cls = params
    params_q = (w1.astype(jnp.bfloat16).astype(jnp.float32), b1, w2, b2,
                fcw, fcb, a_emb, a_cls)
    ref3 = reference_forward(x3.astype(jnp.float32), params_q)
    assert out3.shape == (16, n_classes)
    assert jnp.allclose(out3, ref3, atol=1e-3, rtol=1e-3), "bf16 path mismatch"

    print("KERNEL_OK")
</pallas_src>

<mosaic_0001>
module attributes {stable_mosaic.version = 11 : i64} {
  func.func @classification_kernel(%arg0: i32, %arg1: i32, %arg2: memref<4xf32, #tpu.memory_space<smem>>, %arg3: memref<2x1024xf32, #tpu.memory_space<vmem>>, %arg4: memref<1024x128xf32, #tpu.memory_space<vmem>>, %arg5: memref<1x128xf32, #tpu.memory_space<vmem>>, %arg6: memref<2x128xf32, #tpu.memory_space<vmem>>, %arg7: memref<2x128xf32, #tpu.memory_space<vmem>>, %arg8: memref<1x128xf32, #tpu.memory_space<vmem>>, %arg9: memref<2x128xf32, #tpu.memory_space<vmem>>, %arg10: memref<2x128xf32, #tpu.memory_space<vmem>>) attributes {dimension_semantics = [#tpu.dimension_semantics<parallel>, #tpu.dimension_semantics<arbitrary>], iteration_bounds = array<i64: 1, 1>, scalar_prefetch = 1 : i64, scratch_operands = 1 : i64, tpu.core_type = #tpu.core_type<tc>, window_params = [{transform_indices = @transform_0, window_bounds = array<i64: 2, 1024>}, {transform_indices = @transform_1, window_bounds = array<i64: 1024, 128>}, {pipeline_mode = #tpu.pipeline_mode<synchronous>, transform_indices = @transform_2, window_bounds = array<i64: 1, 128>}, {pipeline_mode = #tpu.pipeline_mode<synchronous>, transform_indices = @transform_3, window_bounds = array<i64: 2, 128>}, {pipeline_mode = #tpu.pipeline_mode<synchronous>, transform_indices = @transform_4, window_bounds = array<i64: 2, 128>}, {pipeline_mode = #tpu.pipeline_mode<synchronous>, transform_indices = @transform_5, window_bounds = array<i64: 1, 128>}, {transform_indices = @transform_6, window_bounds = array<i64: 2, 128>}]} {
    %c0_i32 = arith.constant 0 : i32
    %0 = arith.cmpi eq, %arg1, %c0_i32 : i32
    %1 = arith.extui %0 : i1 to i32
    %c0_i32_0 = arith.constant 0 : i32
    %2 = arith.cmpi ne, %1, %c0_i32_0 : i32
    scf.if %2 {
      %cst_10 = arith.constant 0.000000e+00 : f32
      %12 = vector.broadcast %cst_10 : f32 to vector<2x128xf32>
      %c0_11 = arith.constant 0 : index
      %c0_12 = arith.constant 0 : index
      %13 = vector.load %arg10[%c0_11, %c0_12] : memref<2x128xf32, #tpu.memory_space<vmem>>, vector<2x128xf32>
      tpu.vector_store %arg10[%c0_11, %c0_12], %12 {strides = array<i32>} : memref<2x128xf32, #tpu.memory_space<vmem>>, vector<2x128xf32>,
    } else {
    }
    %c0 = arith.constant 0 : index
    %c0_1 = arith.constant 0 : index
    %3 = vector.load %arg10[%c0, %c0_1] : memref<2x128xf32, #tpu.memory_space<vmem>>, vector<2x128xf32>
    %c0_2 = arith.constant 0 : index
    %c0_3 = arith.constant 0 : index
    %4 = vector.load %arg3[%c0_2, %c0_3] : memref<2x1024xf32, #tpu.memory_space<vmem>>, vector<2x1024xf32>
    %c0_4 = arith.constant 0 : index
    %c0_5 = arith.constant 0 : index
    %5 = vector.load %arg4[%c0_4, %c0_5] : memref<1024x128xf32, #tpu.memory_space<vmem>>, vector<1024x128xf32>
    %cst = arith.constant dense<0.000000e+00> : vector<2x128xf32>
    %6 = tpu.matmul %4, %5, %cst {dimension_numbers = #tpu.dot_dimension_numbers<[1], [0], [0], [1], [0, 0, 1, 1], [], []>} : vector<2x1024xf32>, vector<1024x128xf32>, vector<2x128xf32> -> vector<2x128xf32>
    %7 = arith.addf %3, %6 : vector<2x128xf32>
    %c0_6 = arith.constant 0 : index
    %c0_7 = arith.constant 0 : index
    %8 = vector.load %arg10[%c0_6, %c0_7] : memref<2x128xf32, #tpu.memory_space<vmem>>, vector<2x128xf32>
    tpu.vector_store %arg10[%c0_6, %c0_7], %7 {strides = array<i32>} : memref<2x128xf32, #tpu.memory_space<vmem>>, vector<2x128xf32>,
    %c0_i32_8 = arith.constant 0 : i32
    %9 = arith.cmpi eq, %arg1, %c0_i32_8 : i32
    %10 = arith.extui %9 : i1 to i32
    %c0_i32_9 = arith.constant 0 : i32
    %11 = arith.cmpi ne, %10, %c0_i32_9 : i32
    scf.if %11 {
      %c0_10 = arith.constant 0 : index
      %c0_11 = arith.constant 0 : index
      %12 = vector.load %arg10[%c0_10, %c0_11] : memref<2x128xf32, #tpu.memory_space<vmem>>, vector<2x128xf32>
      %c0_12 = arith.constant 0 : index
      %c0_13 = arith.constant 0 : index
      %13 = vector.load %arg5[%c0_12, %c0_13] : memref<1x128xf32, #tpu.memory_space<vmem>>, vector<1x128xf32>
      %14 = vector.broadcast %13 : vector<1x128xf32> to vector<2x128xf32>
      %15 = arith.addf %12, %14 : vector<2x128xf32>
      %c2 = arith.constant 2 : index
      %16 = memref.load %arg2[%c2] : memref<4xf32, #tpu.memory_space<smem>>
      %cst_14 = arith.constant 0.000000e+00 : f32
      %17 = vector.broadcast %cst_14 : f32 to vector<2x128xf32>
      %18 = arith.cmpf oge, %15, %17 : vector<2x128xf32>
      %19 = vector.broadcast %16 : f32 to vector<2x128xf32>
      %20 = arith.mulf %19, %15 : vector<2x128xf32>
      %21 = arith.select %18, %15, %20 : vector<2x128xi1>, vector<2x128xf32>
      %c0_15 = arith.constant 0 : index
      %c0_16 = arith.constant 0 : index
      %22 = vector.load %arg6[%c0_15, %c0_16] : memref<2x128xf32, #tpu.memory_space<vmem>>, vector<1x128xf32>
      %23 = vector.broadcast %22 : vector<1x128xf32> to vector<2x128xf32>
      %24 = arith.mulf %21, %23 : vector<2x128xf32>
      %cst_17 = arith.constant dense<0.000000e+00> : vector<2xf32>
      %25 = vector.multi_reduction <add>, %24, %cst_17 [1] : vector<2x128xf32> to vector<2xf32>
      %26 = vector.shape_cast %25 : vector<2xf32> to vector<2x1xf32>
      %c0_18 = arith.constant 0 : index
      %27 = memref.load %arg2[%c0_18] : memref<4xf32, #tpu.memory_space<smem>>
      %28 = vector.broadcast %27 : f32 to vector<2x1xf32>
      %29 = arith.addf %26, %28 : vector<2x1xf32>
      %c1 = arith.constant 1 : index
      %c0_19 = arith.constant 0 : index
      %30 = vector.load %arg6[%c1, %c0_19] : memref<2x128xf32, #tpu.memory_space<vmem>>, vector<1x128xf32>
      %31 = vector.broadcast %30 : vector<1x128xf32> to vector<2x128xf32>
      %32 = arith.mulf %21, %31 : vector<2x128xf32>
      %cst_20 = arith.constant dense<0.000000e+00> : vector<2xf32>
      %33 = vector.multi_reduction <add>, %32, %cst_20 [1] : vector<2x128xf32> to vector<2xf32>
      %34 = vector.shape_cast %33 : vector<2xf32> to vector<2x1xf32>
      %c1_21 = arith.constant 1 : index
      %35 = memref.load %arg2[%c1_21] : memref<4xf32, #tpu.memory_space<smem>>
      %36 = vector.broadcast %35 : f32 to vector<2x1xf32>
      %37 = arith.addf %34, %36 : vector<2x1xf32>
      %c3 = arith.constant 3 : index
      %38 = memref.load %arg2[%c3] : memref<4xf32, #tpu.memory_space<smem>>
      %cst_22 = arith.constant 0.000000e+00 : f32
      %39 = vector.broadcast %cst_22 : f32 to vector<2x1xf32>
      %40 = arith.cmpf oge, %29, %39 : vector<2x1xf32>
      %41 = vector.broadcast %38 : f32 to vector<2x1xf32>
      %42 = arith.mulf %41, %29 : vector<2x1xf32>
      %43 = arith.select %40, %29, %42 : vector<2x1xi1>, vector<2x1xf32>
      %cst_23 = arith.constant 0.000000e+00 : f32
      %44 = vector.broadcast %cst_23 : f32 to vector<2x1xf32>
      %45 = arith.cmpf oge, %37, %44 : vector<2x1xf32>
      %46 = vector.broadcast %38 : f32 to vector<2x1xf32>
      %47 = arith.mulf %46, %37 : vector<2x1xf32>
      %48 = arith.select %45, %37, %47 : vector<2x1xi1>, vector<2x1xf32>
      %c0_24 = arith.constant 0 : index
      %c0_25 = arith.constant 0 : index
      %49 = vector.load %arg7[%c0_24, %c0_25] : memref<2x128xf32, #tpu.memory_space<vmem>>, vector<1x128xf32>
      %50 = vector.broadcast %43 : vector<2x1xf32> to vector<2x128xf32>
      %51 = vector.broadcast %49 : vector<1x128xf32> to vector<2x128xf32>
      %52 = arith.mulf %50, %51 : vector<2x128xf32>
      %c1_26 = arith.constant 1 : index
      %c0_27 = arith.constant 0 : index
      %53 = vector.load %arg7[%c1_26, %c0_27] : memref<2x128xf32, #tpu.memory_space<vmem>>, vector<1x128xf32>
      %54 = vector.broadcast %48 : vector<2x1xf32> to vector<2x128xf32>
      %55 = vector.broadcast %53 : vector<1x128xf32> to vector<2x128xf32>
      %56 = arith.mulf %54, %55 : vector<2x128xf32>
      %57 = arith.addf %52, %56 : vector<2x128xf32>
      %c0_28 = arith.constant 0 : index
      %c0_29 = arith.constant 0 : index
      %58 = vector.load %arg8[%c0_28, %c0_29] : memref<1x128xf32, #tpu.memory_space<vmem>>, vector<1x128xf32>
      %59 = vector.broadcast %58 : vector<1x128xf32> to vector<2x128xf32>
      %60 = arith.addf %57, %59 : vector<2x128xf32>
      %cst_30 = arith.constant dense<0xFF800000> : vector<2xf32>
      %61 = vector.multi_reduction <maximumf>, %60, %cst_30 [1] : vector<2x128xf32> to vector<2xf32>
      %62 = vector.shape_cast %61 : vector<2xf32> to vector<2x1xf32>
      %63 = vector.broadcast %62 : vector<2x1xf32> to vector<2x128xf32>
      %64 = arith.subf %60, %63 : vector<2x128xf32>
      %65 = math.exp %64 : vector<2x128xf32>
      %cst_31 = arith.constant dense<0.000000e+00> : vector<2xf32>
      %66 = vector.multi_reduction <add>, %65, %cst_31 [1] : vector<2x128xf32> to vector<2xf32>
      %67 = vector.shape_cast %66 : vector<2xf32> to vector<2x1xf32>
      %68 = math.log %67 : vector<2x1xf32>
      %69 = vector.broadcast %68 : vector<2x1xf32> to vector<2x128xf32>
      %70 = arith.subf %64, %69 : vector<2x128xf32>
      %c0_32 = arith.constant 0 : index
      %c0_33 = arith.constant 0 : index
      %71 = vector.load %arg9[%c0_32, %c0_33] : memref<2x128xf32, #tpu.memory_space<vmem>>, vector<2x128xf32>
      tpu.vector_store %arg9[%c0_32, %c0_33], %70 {strides = array<i32>} : memref<2x128xf32, #tpu.memory_space<vmem>>, vector<2x128xf32>,
    } else {
    }
    return
  }
  func.func @transform_0(%arg0: i32, %arg1: i32, %arg2: memref<4xf32, #tpu.memory_space<smem>>) -> (i32, i32) {
    %c0_i32 = arith.constant 0 : i32
    return %arg0, %arg1 : i32, i32
  }
  func.func @transform_1(%arg0: i32, %arg1: i32, %arg2: memref<4xf32, #tpu.memory_space<smem>>) -> (i32, i32) {
    %c0_i32 = arith.constant 0 : i32
    %c0_i32_0 = arith.constant 0 : i32
    return %arg1, %c0_i32 : i32, i32
  }
  func.func @transform_2(%arg0: i32, %arg1: i32, %arg2: memref<4xf32, #tpu.memory_space<smem>>) -> (i32, i32) {
    %c0_i32 = arith.constant 0 : i32
    %c0_i32_0 = arith.constant 0 : i32
    %c0_i32_1 = arith.constant 0 : i32
    return %c0_i32, %c0_i32_0 : i32, i32
  }
  func.func @transform_3(%arg0: i32, %arg1: i32, %arg2: memref<4xf32, #tpu.memory_space<smem>>) -> (i32, i32) {
    %c0_i32 = arith.constant 0 : i32
    %c0_i32_0 = arith.constant 0 : i32
    %c0_i32_1 = arith.constant 0 : i32
    return %c0_i32, %c0_i32_0 : i32, i32
  }
  func.func @transform_4(%arg0: i32, %arg1: i32, %arg2: memref<4xf32, #tpu.memory_space<smem>>) -> (i32, i32) {
    %c0_i32 = arith.constant 0 : i32
    %c0_i32_0 = arith.constant 0 : i32
    %c0_i32_1 = arith.constant 0 : i32
    return %c0_i32, %c0_i32_0 : i32, i32
  }
  func.func @transform_5(%arg0: i32, %arg1: i32, %arg2: memref<4xf32, #tpu.memory_space<smem>>) -> (i32, i32) {
    %c0_i32 = arith.constant 0 : i32
    %c0_i32_0 = arith.constant 0 : i32
    %c0_i32_1 = arith.constant 0 : i32
    return %c0_i32, %c0_i32_0 : i32, i32
  }
  func.func @transform_6(%arg0: i32, %arg1: i32, %arg2: memref<4xf32, #tpu.memory_space<smem>>) -> (i32, i32) {
    %c0_i32 = arith.constant 0 : i32
    %c0_i32_0 = arith.constant 0 : i32
    return %arg0, %c0_i32 : i32, i32
  }
}

</mosaic_0001>

<llo_original>
// kernel: classification_net_forward.1
$region0: #{classification_net_forward.1}
  #allocation0 [shape = 'u32[]', space=smem, size = 0x4, offset = 0x4, fixed_abs, tag = 'smem constant byte address 0x4 - core index']
  #allocation1 [shape = 'u32[144,128]{1,0:T(1,128)}', space=vmem, size = 0x12000, scoped, tag = 'internal scratch']
  #allocation2 [shape = 'f32[2,128]{1,0:T(2,128)}', space=vmem, size = 0x400, scoped, tag = 'scratch operand']
  #allocation3 [shape = 's32[1]{0}', space=sflag, size = 0x4, scoped, tag = 'scoped memory for classification_net_forward.1']
  #allocation4 [shape = 'u8[512]{0}', space=smem, size = 0x200, scoped, tag = 'prefetched SMEM operand 0']
  %s0 = inlined_call_operand.vmem [shape: f32[4], index: 0, kind: input, shape index: {}]
  %s1 = inlined_call_operand.vmem [shape: f32[2,1024], index: 1, kind: input, shape index: {}]
  %s2 = inlined_call_operand.vmem [shape: f32[1024,128], index: 2, kind: input, shape index: {}]
  %s3 = inlined_call_operand.vmem [shape: f32[1,128], index: 3, kind: input, shape index: {}]
  %s4 = inlined_call_operand.vmem [shape: f32[2,128], index: 4, kind: input, shape index: {}]
  %s5 = inlined_call_operand.vmem [shape: f32[2,128], index: 5, kind: input, shape index: {}]
  %s6 = inlined_call_operand.vmem [shape: f32[1,128], index: 6, kind: input, shape index: {}]
  %s7 = inlined_call_operand.hbm [shape: f32[2,128], index: 7, kind: output, shape index: {}]
  %s8 = sld [smem:[#allocation0]]
  $region42: #{classification_net_forward.1} parent=0
    _
  %s10 = ssub.s32 1, %s8
  %s11 = scalar_select 0, %s10, %s8
  %s12 = sshll.u32 %s0, 4
  %s13 = int_to_ptr.vmem [resolvable:$true] %s12
  %15 = dma.vmem_to_smem %s13, 16, [#allocation4], [#allocation3]
  %16 = dma.done [#allocation3], 16
  %17 = sfence
  $region1: #{classification_net_forward.1} parent=0
    #allocation5 [shape = 'u8[1024]{0}', space=vmem, size = 0x400, scoped, tag = 'output window, operand 0, single buffered']
    #allocation6 [shape = 's32[1]{0}', space=sflag, size = 0x4, scoped, tag = 'scoped memory for classification_net_forward.1']
    %18 = vsyncpa [#allocation6], 0
    // Predicated region
    $region2: #{classification_net_forward.1} parent=1 // pred_check
      _
    $region3: #{classification_net_forward.1} parent=1 // pred_check_branch
      %20 = sbr.rel (0) target = $region5
    $region4: #{classification_net_forward.1} parent=1 // pred_region
      _
    $region5: #{classification_net_forward.1} parent=1 // pred_fallthru
      _
    // Predicated region
    $region6: #{classification_net_forward.1} parent=1 // pred_check
      _
    $region7: #{classification_net_forward.1} parent=1 // pred_check_branch
      %22 = sbr.rel (0) target = $region9
    $region8: #{classification_net_forward.1} parent=1 // pred_region
      _
    $region9: #{classification_net_forward.1} parent=1 // pred_fallthru
      _
    // Predicated region
    $region10: #{classification_net_forward.1} parent=1 // pred_check
      _
    $region11: #{classification_net_forward.1} parent=1 // pred_check_branch
      %24 = sbr.rel (0) target = $region13
    $region12: #{classification_net_forward.1} parent=1 // pred_region
      _
    $region13: #{classification_net_forward.1} parent=1 // pred_fallthru
      _
    // Predicated region
    $region14: #{classification_net_forward.1} parent=1 // pred_check
      _
    $region15: #{classification_net_forward.1} parent=1 // pred_check_branch
      %26 = sbr.rel (0) target = $region17
    $region16: #{classification_net_forward.1} parent=1 // pred_region
      _
    $region17: #{classification_net_forward.1} parent=1 // pred_fallthru
      _
    // Predicated region
    $region18: #{classification_net_forward.1} parent=1 // pred_check
      _
    $region19: #{classification_net_forward.1} parent=1 // pred_check_branch
      %28 = sbr.rel (0) target = $region21
    $region20: #{classification_net_forward.1} parent=1 // pred_region
      _
    $region21: #{classification_net_forward.1} parent=1 // pred_fallthru
      _
    // Predicated region
    $region22: #{classification_net_forward.1} parent=1 // pred_check
      _
    $region23: #{classification_net_forward.1} parent=1 // pred_check_branch
      %30 = sbr.rel (0) target = $region25
    $region24: #{classification_net_forward.1} parent=1 // pred_region
      _
    $region25: #{classification_net_forward.1} parent=1 // pred_fallthru
      _
    %p31 = scmp.eq.s32.totalorder 0, 0
    // Predicated region
    $region26: #{classification_net_forward.1} parent=1 // pred_check
      %p32 = pneg %p31
    $region27: #{classification_net_forward.1} parent=1 // pred_check_branch
      %34 = sbr.rel (%p32) target = $region29
    $region28: #{classification_net_forward.1} parent=1 // pred_region
      %35 = vst [vmem:[#allocation2] sm:$0x3] 0.0
    $region29: #{classification_net_forward.1} parent=1 // pred_fallthru
      _
    %v36 = vld [vmem:[#allocation2] sm:$0x3]
    %v37 = vld [vmem:[%s1] sm:$0xff]
    %v38 = vld [vmem:[%s1 + $0x8] sm:$0xff]
    %v39 = vld [vmem:[%s2] sm:$0xff]
    %v40 = vld [vmem:[%s2 + $0x8] sm:$0xff]
    %v41 = vld [vmem:[%s2 + $0x10] sm:$0xff]
    %v42 = vld [vmem:[%s2 + $0x18] sm:$0xff]
    %v43 = vld [vmem:[%s2 + $0x20] sm:$0xff]
    %v44 = vld [vmem:[%s2 + $0x28] sm:$0xff]
    %v45 = vld [vmem:[%s2 + $0x30] sm:$0xff]
    %v46 = vld [vmem:[%s2 + $0x38] sm:$0xff]
    %v47 = vld [vmem:[%s2 + $0x40] sm:$0xff]
    %v48 = vld [vmem:[%s2 + $0x48] sm:$0xff]
    %v49 = vld [vmem:[%s2 + $0x50] sm:$0xff]
    %v50 = vld [vmem:[%s2 + $0x58] sm:$0xff]
    %v51 = vld [vmem:[%s2 + $0x60] sm:$0xff]
    %v52 = vld [vmem:[%s2 + $0x68] sm:$0xff]
    %v53 = vld [vmem:[%s2 + $0x70] sm:$0xff]
    %v54 = vld [vmem:[%s2 + $0x78] sm:$0xff]
    %v55 = vld [vmem:[%s2 + $0x80] sm:$0xff]
    %v56 = vld [vmem:[%s2 + $0x88] sm:$0xff]
    %v57 = vld [vmem:[%s2 + $0x90] sm:$0xff]
    %v58 = vld [vmem:[%s2 + $0x98] sm:$0xff]
    %v59 = vld [vmem:[%s2 + $0xa0] sm:$0xff]
    %v60 = vld [vmem:[%s2 + $0xa8] sm:$0xff]
    %v61 = vld [vmem:[%s2 + $0xb0] sm:$0xff]
    %v62 = vld [vmem:[%s2 + $0xb8] sm:$0xff]
    %v63 = vld [vmem:[%s2 + $0xc0] sm:$0xff]
    %v64 = vld [vmem:[%s2 + $0xc8] sm:$0xff]
    %v65 = vld [vmem:[%s2 + $0xd0] sm:$0xff]
    %v66 = vld [vmem:[%s2 + $0xd8] sm:$0xff]
    %v67 = vld [vmem:[%s2 + $0xe0] sm:$0xff]
    %v68 = vld [vmem:[%s2 + $0xe8] sm:$0xff]
    %v69 = vld [vmem:[%s2 + $0xf0] sm:$0xff]
    %v70 = vld [vmem:[%s2 + $0xf8] sm:$0xff]
    %v71 = vld [vmem:[%s2 + $0x100] sm:$0xff]
    %v72 = vld [vmem:[%s2 + $0x108] sm:$0xff]
    %v73 = vld [vmem:[%s2 + $0x110] sm:$0xff]
    %v74 = vld [vmem:[%s2 + $0x118] sm:$0xff]
    %v75 = vld [vmem:[%s2 + $0x120] sm:$0xff]
    %v76 = vld [vmem:[%s2 + $0x128] sm:$0xff]
    %v77 = vld [vmem:[%s2 + $0x130] sm:$0xff]
    %v78 = vld [vmem:[%s2 + $0x138] sm:$0xff]
    %v79 = vld [vmem:[%s2 + $0x140] sm:$0xff]
    %v80 = vld [vmem:[%s2 + $0x148] sm:$0xff]
    %v81 = vld [vmem:[%s2 + $0x150] sm:$0xff]
    %v82 = vld [vmem:[%s2 + $0x158] sm:$0xff]
    %v83 = vld [vmem:[%s2 + $0x160] sm:$0xff]
    %v84 = vld [vmem:[%s2 + $0x168] sm:$0xff]
    %v85 = vld [vmem:[%s2 + $0x170] sm:$0xff]
    %v86 = vld [vmem:[%s2 + $0x178] sm:$0xff]
    %v87 = vld [vmem:[%s2 + $0x180] sm:$0xff]
    %v88 = vld [vmem:[%s2 + $0x188] sm:$0xff]
    %v89 = vld [vmem:[%s2 + $0x190] sm:$0xff]
    %v90 = vld [vmem:[%s2 + $0x198] sm:$0xff]
    %v91 = vld [vmem:[%s2 + $0x1a0] sm:$0xff]
    %v92 = vld [vmem:[%s2 + $0x1a8] sm:$0xff]
    %v93 = vld [vmem:[%s2 + $0x1b0] sm:$0xff]
    %v94 = vld [vmem:[%s2 + $0x1b8] sm:$0xff]
    %v95 = vld [vmem:[%s2 + $0x1c0] sm:$0xff]
    %v96 = vld [vmem:[%s2 + $0x1c8] sm:$0xff]
    %v97 = vld [vmem:[%s2 + $0x1d0] sm:$0xff]
    %v98 = vld [vmem:[%s2 + $0x1d8] sm:$0xff]
    %v99 = vld [vmem:[%s2 + $0x1e0] sm:$0xff]
    %v100 = vld [vmem:[%s2 + $0x1e8] sm:$0xff]
    %v101 = vld [vmem:[%s2 + $0x1f0] sm:$0xff]
    %v102 = vld [vmem:[%s2 + $0x1f8] sm:$0xff]
    %v103 = vld [vmem:[%s2 + $0x200] sm:$0xff]
    %v104 = vld [vmem:[%s2 + $0x208] sm:$0xff]
    %v105 = vld [vmem:[%s2 + $0x210] sm:$0xff]
    %v106 = vld [vmem:[%s2 + $0x218] sm:$0xff]
    %v107 = vld [vmem:[%s2 + $0x220] sm:$0xff]
    %v108 = vld [vmem:[%s2 + $0x228] sm:$0xff]
    %v109 = vld [vmem:[%s2 + $0x230] sm:$0xff]
    %v110 = vld [vmem:[%s2 + $0x238] sm:$0xff]
    %v111 = vld [vmem:[%s2 + $0x240] sm:$0xff]
    %v112 = vld [vmem:[%s2 + $0x248] sm:$0xff]
    %v113 = vld [vmem:[%s2 + $0x250] sm:$0xff]
    %v114 = vld [vmem:[%s2 + $0x258] sm:$0xff]
    %v115 = vld [vmem:[%s2 + $0x260] sm:$0xff]
    %v116 = vld [vmem:[%s2 + $0x268] sm:$0xff]
    %v117 = vld [vmem:[%s2 + $0x270] sm:$0xff]
    %v118 = vld [vmem:[%s2 + $0x278] sm:$0xff]
    %v119 = vld [vmem:[%s2 + $0x280] sm:$0xff]
    %v120 = vld [vmem:[%s2 + $0x288] sm:$0xff]
    %v121 = vld [vmem:[%s2 + $0x290] sm:$0xff]
    %v122 = vld [vmem:[%s2 + $0x298] sm:$0xff]
    %v123 = vld [vmem:[%s2 + $0x2a0] sm:$0xff]
    %v124 = vld [vmem:[%s2 + $0x2a8] sm:$0xff]
    %v125 = vld [vmem:[%s2 + $0x2b0] sm:$0xff]
    %v126 = vld [vmem:[%s2 + $0x2b8] sm:$0xff]
    %v127 = vld [vmem:[%s2 + $0x2c0] sm:$0xff]
    %v128 = vld [vmem:[%s2 + $0x2c8] sm:$0xff]
    %v129 = vld [vmem:[%s2 + $0x2d0] sm:$0xff]
    %v130 = vld [vmem:[%s2 + $0x2d8] sm:$0xff]
    %v131 = vld [vmem:[%s2 + $0x2e0] sm:$0xff]
    %v132 = vld [vmem:[%s2 + $0x2e8] sm:$0xff]
    %v133 = vld [vmem:[%s2 + $0x2f0] sm:$0xff]
    %v134 = vld [vmem:[%s2 + $0x2f8] sm:$0xff]
    %v135 = vld [vmem:[%s2 + $0x300] sm:$0xff]
    %v136 = vld [vmem:[%s2 + $0x308] sm:$0xff]
    %v137 = vld [vmem:[%s2 + $0x310] sm:$0xff]
    %v138 = vld [vmem:[%s2 + $0x318] sm:$0xff]
    %v139 = vld [vmem:[%s2 + $0x320] sm:$0xff]
    %v140 = vld [vmem:[%s2 + $0x328] sm:$0xff]
    %v141 = vld [vmem:[%s2 + $0x330] sm:$0xff]
    %v142 = vld [vmem:[%s2 + $0x338] sm:$0xff]
    %v143 = vld [vmem:[%s2 + $0x340] sm:$0xff]
    %v144 = vld [vmem:[%s2 + $0x348] sm:$0xff]
    %v145 = vld [vmem:[%s2 + $0x350] sm:$0xff]
    %v146 = vld [vmem:[%s2 + $0x358] sm:$0xff]
    %v147 = vld [vmem:[%s2 + $0x360] sm:$0xff]
    %v148 = vld [vmem:[%s2 + $0x368] sm:$0xff]
    %v149 = vld [vmem:[%s2 + $0x370] sm:$0xff]
    %v150 = vld [vmem:[%s2 + $0x378] sm:$0xff]
    %v151 = vld [vmem:[%s2 + $0x380] sm:$0xff]
    %v152 = vld [vmem:[%s2 + $0x388] sm:$0xff]
    %v153 = vld [vmem:[%s2 + $0x390] sm:$0xff]
    %v154 = vld [vmem:[%s2 + $0x398] sm:$0xff]
    %v155 = vld [vmem:[%s2 + $0x3a0] sm:$0xff]
    %v156 = vld [vmem:[%s2 + $0x3a8] sm:$0xff]
    %v157 = vld [vmem:[%s2 + $0x3b0] sm:$0xff]
    %v158 = vld [vmem:[%s2 + $0x3b8] sm:$0xff]
    %v159 = vld [vmem:[%s2 + $0x3c0] sm:$0xff]
    %v160 = vld [vmem:[%s2 + $0x3c8] sm:$0xff]
    %v161 = vld [vmem:[%s2 + $0x3d0] sm:$0xff]
    %v162 = vld [vmem:[%s2 + $0x3d8] sm:$0xff]
    %v163 = vld [vmem:[%s2 + $0x3e0] sm:$0xff]
    %v164 = vld [vmem:[%s2 + $0x3e8] sm:$0xff]
    %v165 = vld [vmem:[%s2 + $0x3f0] sm:$0xff]
    %v166 = vld [vmem:[%s2 + $0x3f8] sm:$0xff]
    %v169 = vcombine.high %v37, %v37
    %v171 = vunpack.c.l.s4 1983009808
    %v172 = vunpack.c.0.s8 %v171
    %v173 = vlaneseq
    %v174 = vshrl.u32 %v173, 7
    %v175 = vsub.s32 %v172, %v174
    %v176 = vrot.slane %v37, %v175
    %v178 = vunpack.c.l.s4 1983009808
    %v179 = vunpack.c.0.s8 %v178
    %v180 = vlaneseq
    %v181 = vshrl.u32 %v180, 7
    %v182 = vsub.s32 %v179, %v181
    %v183 = vrot.slane %v169, %v182
    %v184 = vcombine.high %v176, %v176
    %v185 = vcombine.high %v183, %v183
    %v186 = vcombine.high %v38, %v38
    %v188 = vunpack.c.l.s4 1983009808
    %v189 = vunpack.c.0.s8 %v188
    %v190 = vlaneseq
    %v191 = vshrl.u32 %v190, 7
    %v192 = vsub.s32 %v189, %v191
    %v193 = vrot.slane %v38, %v192
    %v195 = vunpack.c.l.s4 1983009808
    %v196 = vunpack.c.0.s8 %v195
    %v197 = vlaneseq
    %v198 = vshrl.u32 %v197, 7
    %v199 = vsub.s32 %v196, %v198
    %v200 = vrot.slane %v186, %v199
    %v201 = vcombine.high %v193, %v193
    %v202 = vcombine.high %v200, %v200
    %211 = vmatprep.subr.mxu0 0.0
    %212 = vmatpush1.msra.mxu0 %v39
    %213 = vmatprep.subr.mxu0 0.0
    %214 = vmatpush1.msra.mxu0 %v40
    %215 = vmatprep.subr.mxu0 0.0
    %216 = vmatpush1.msra.mxu0 %v41
    %217 = vmatprep.subr.mxu0 0.0
    %218 = vmatpush1.msra.mxu0 %v42
    %219 = vmatprep.subr.mxu0 0.0
    %220 = vmatpush1.msra.mxu0 %v43
    %221 = vmatprep.subr.mxu0 0.0
    %222 = vmatpush1.msra.mxu0 %v44
    %223 = vmatprep.subr.mxu0 0.0
    %224 = vmatpush1.msra.mxu0 %v45
    %225 = vmatprep.subr.mxu0 0.0
    %226 = vmatpush1.msra.mxu0 %v46
    %227 = vmatprep.subr.mxu0 0.0
    %228 = vmatpush1.msra.mxu0 %v47
    %229 = vmatprep.subr.mxu0 0.0
    %230 = vmatpush1.msra.mxu0 %v48
    %231 = vmatprep.subr.mxu0 0.0
    %232 = vmatpush1.msra.mxu0 %v49
    %233 = vmatprep.subr.mxu0 0.0
    %234 = vmatpush1.msra.mxu0 %v50
    %235 = vmatprep.subr.mxu0 0.0
    %236 = vmatpush1.msra.mxu0 %v51
    %237 = vmatprep.subr.mxu0 0.0
    %238 = vmatpush1.msra.mxu0 %v52
    %239 = vmatprep.subr.mxu0 0.0
    %240 = vmatpush1.msra.mxu0 %v53
    %241 = vmatprep.subr.mxu0 0.0
    %242 = vmatpush1.msra.mxu0 %v54
    %243 = vmatprep.subr.mxu0 0.0
    %244 = vmatpush1.msra.mxu0 %v55
    %245 = vmatprep.subr.mxu0 0.0
    %246 = vmatpush1.msra.mxu0 %v56
    %247 = vmatprep.subr.mxu0 0.0
    %248 = vmatpush1.msra.mxu0 %v57
    %249 = vmatprep.subr.mxu0 0.0
    %250 = vmatpush1.msra.mxu0 %v58
    %251 = vmatprep.subr.mxu0 0.0
    %252 = vmatpush1.msra.mxu0 %v59
    %253 = vmatprep.subr.mxu0 0.0
    %254 = vmatpush1.msra.mxu0 %v60
    %255 = vmatprep.subr.mxu0 0.0
    %256 = vmatpush1.msra.mxu0 %v61
    %257 = vmatprep.subr.mxu0 0.0
    %258 = vmatpush1.msra.mxu0 %v62
    %259 = vmatprep.subr.mxu0 0.0
    %260 = vmatpush1.msra.mxu0 %v63
    %261 = vmatprep.subr.mxu0 0.0
    %262 = vmatpush1.msra.mxu0 %v64
    %263 = vmatprep.subr.mxu0 0.0
    %264 = vmatpush1.msra.mxu0 %v65
    %265 = vmatprep.subr.mxu0 0.0
    %266 = vmatpush1.msra.mxu0 %v66
    %267 = vmatprep.subr.mxu0 0.0
    %268 = vmatpush1.msra.mxu0 %v67
    %269 = vmatprep.subr.mxu0 0.0
    %270 = vmatpush1.msra.mxu0 %v68
    %271 = vmatprep.subr.mxu0 0.0
    %272 = vmatpush1.msra.mxu0 %v69
    %273 = vmatprep.subr.mxu0 0.0
    %274 = vmatpush1.msra.mxu0 %v70
    %275 = vmatprep.mubr.f32.mxu0 %v184
    %276 = vmatmul.mubr.f32.gmra.mrb[0].mxu0 %v176
    %v277 = vpop.f32.mrb[0].mxu0
    %v278 = vadd.f32 0.0, %v277
    %v279 = vpop.f32.mrb[0].mxu0
    %280 = vdwg.mxu0
    %281 = vmatprep.subr.mxu0 0.0
    %282 = vmatpush1.msra.mxu0 %v71
    %283 = vmatprep.subr.mxu0 0.0
    %284 = vmatpush1.msra.mxu0 %v72
    %285 = vmatprep.subr.mxu0 0.0
    %286 = vmatpush1.msra.mxu0 %v73
    %287 = vmatprep.subr.mxu0 0.0
    %288 = vmatpush1.msra.mxu0 %v74
    %289 = vmatprep.subr.mxu0 0.0
    %290 = vmatpush1.msra.mxu0 %v75
    %291 = vmatprep.subr.mxu0 0.0
    %292 = vmatpush1.msra.mxu0 %v76
    %293 = vmatprep.subr.mxu0 0.0
    %294 = vmatpush1.msra.mxu0 %v77
    %295 = vmatprep.subr.mxu0 0.0
    %296 = vmatpush1.msra.mxu0 %v78
    %297 = vmatprep.subr.mxu0 0.0
    %298 = vmatpush1.msra.mxu0 %v79
    %299 = vmatprep.subr.mxu0 0.0
    %300 = vmatpush1.msra.mxu0 %v80
    %301 = vmatprep.subr.mxu0 0.0
    %302 = vmatpush1.msra.mxu0 %v81
    %303 = vmatprep.subr.mxu0 0.0
    %304 = vmatpush1.msra.mxu0 %v82
    %305 = vmatprep.subr.mxu0 0.0
    %306 = vmatpush1.msra.mxu0 %v83
    %307 = vmatprep.subr.mxu0 0.0
    %308 = vmatpush1.msra.mxu0 %v84
    %309 = vmatprep.subr.mxu0 0.0
    %310 = vmatpush1.msra.mxu0 %v85
    %311 = vmatprep.subr.mxu0 0.0
    %312 = vmatpush1.msra.mxu0 %v86
    %313 = vmatprep.subr.mxu0 0.0
    %314 = vmatpush1.msra.mxu0 %v87
    %315 = vmatprep.subr.mxu0 0.0
    %316 = vmatpush1.msra.mxu0 %v88
    %317 = vmatprep.subr.mxu0 0.0
    %318 = vmatpush1.msra.mxu0 %v89
    %319 = vmatprep.subr.mxu0 0.0
    %320 = vmatpush1.msra.mxu0 %v90
    %321 = vmatprep.subr.mxu0 0.0
    %322 = vmatpush1.msra.mxu0 %v91
    %323 = vmatprep.subr.mxu0 0.0
    %324 = vmatpush1.msra.mxu0 %v92
    %325 = vmatprep.subr.mxu0 0.0
    %326 = vmatpush1.msra.mxu0 %v93
    %327 = vmatprep.subr.mxu0 0.0
    %328 = vmatpush1.msra.mxu0 %v94
    %329 = vmatprep.subr.mxu0 0.0
    %330 = vmatpush1.msra.mxu0 %v95
    %331 = vmatprep.subr.mxu0 0.0
    %332 = vmatpush1.msra.mxu0 %v96
    %333 = vmatprep.subr.mxu0 0.0
    %334 = vmatpush1.msra.mxu0 %v97
    %335 = vmatprep.subr.mxu0 0.0
    %336 = vmatpush1.msra.mxu0 %v98
    %337 = vmatprep.subr.mxu0 0.0
    %338 = vmatpush1.msra.mxu0 %v99
    %339 = vmatprep.subr.mxu0 0.0
    %340 = vmatpush1.msra.mxu0 %v100
    %341 = vmatprep.subr.mxu0 0.0
    %342 = vmatpush1.msra.mxu0 %v101
    %343 = vmatprep.subr.mxu0 0.0
    %344 = vmatpush1.msra.mxu0 %v102
    %345 = vmatprep.mubr.f32.mxu0 %v185
    %346 = vmatmul.mubr.f32.gmra.mrb[0].mxu0 %v183
    %v347 = vpop.f32.mrb[0].mxu0
    %v348 = vadd.f32 %v278, %v347
    %v349 = vpop.f32.mrb[0].mxu0
    %350 = vdwg.mxu0
    %351 = vmatprep.subr.mxu0 0.0
    %352 = vmatpush1.msra.mxu0 %v103
    %353 = vmatprep.subr.mxu0 0.0
    %354 = vmatpush1.msra.mxu0 %v104
    %355 = vmatprep.subr.mxu0 0.0
    %356 = vmatpush1.msra.mxu0 %v105
    %357 = vmatprep.subr.mxu0 0.0
    %358 = vmatpush1.msra.mxu0 %v106
    %359 = vmatprep.subr.mxu0 0.0
    %360 = vmatpush1.msra.mxu0 %v107
    %361 = vmatprep.subr.mxu0 0.0
    %362 = vmatpush1.msra.mxu0 %v108
    %363 = vmatprep.subr.mxu0 0.0
    %364 = vmatpush1.msra.mxu0 %v109
    %365 = vmatprep.subr.mxu0 0.0
    %366 = vmatpush1.msra.mxu0 %v110
    %367 = vmatprep.subr.mxu0 0.0
    %368 = vmatpush1.msra.mxu0 %v111
    %369 = vmatprep.subr.mxu0 0.0
    %370 = vmatpush1.msra.mxu0 %v112
    %371 = vmatprep.subr.mxu0 0.0
    %372 = vmatpush1.msra.mxu0 %v113
    %373 = vmatprep.subr.mxu0 0.0
    %374 = vmatpush1.msra.mxu0 %v114
    %375 = vmatprep.subr.mxu0 0.0
    %376 = vmatpush1.msra.mxu0 %v115
    %377 = vmatprep.subr.mxu0 0.0
    %378 = vmatpush1.msra.mxu0 %v116
    %379 = vmatprep.subr.mxu0 0.0
    %380 = vmatpush1.msra.mxu0 %v117
    %381 = vmatprep.subr.mxu0 0.0
    %382 = vmatpush1.msra.mxu0 %v118
    %383 = vmatprep.subr.mxu0 0.0
    %384 = vmatpush1.msra.mxu0 %v119
    %385 = vmatprep.subr.mxu0 0.0
    %386 = vmatpush1.msra.mxu0 %v120
    %387 = vmatprep.subr.mxu0 0.0
    %388 = vmatpush1.msra.mxu0 %v121
    %389 = vmatprep.subr.mxu0 0.0
    %390 = vmatpush1.msra.mxu0 %v122
    %391 = vmatprep.subr.mxu0 0.0
    %392 = vmatpush1.msra.mxu0 %v123
    %393 = vmatprep.subr.mxu0 0.0
    %394 = vmatpush1.msra.mxu0 %v124
    %395 = vmatprep.subr.mxu0 0.0
    %396 = vmatpush1.msra.mxu0 %v125
    %397 = vmatprep.subr.mxu0 0.0
    %398 = vmatpush1.msra.mxu0 %v126
    %399 = vmatprep.subr.mxu0 0.0
    %400 = vmatpush1.msra.mxu0 %v127
    %401 = vmatprep.subr.mxu0 0.0
    %402 = vmatpush1.msra.mxu0 %v128
    %403 = vmatprep.subr.mxu0 0.0
    %404 = vmatpush1.msra.mxu0 %v129
    %405 = vmatprep.subr.mxu0 0.0
    %406 = vmatpush1.msra.mxu0 %v130
    %407 = vmatprep.subr.mxu0 0.0
    %408 = vmatpush1.msra.mxu0 %v131
    %409 = vmatprep.subr.mxu0 0.0
    %410 = vmatpush1.msra.mxu0 %v132
    %411 = vmatprep.subr.mxu0 0.0
    %412 = vmatpush1.msra.mxu0 %v133
    %413 = vmatprep.subr.mxu0 0.0
    %414 = vmatpush1.msra.mxu0 %v134
    %415 = vmatprep.mubr.f32.mxu0 %v201
    %416 = vmatmul.mubr.f32.gmra.mrb[0].mxu0 %v193
    %v417 = vpop.f32.mrb[0].mxu0
    %v418 = vadd.f32 %v348, %v417
    %v419 = vpop.f32.mrb[0].mxu0
    %420 = vdwg.mxu0
    %421 = vmatprep.subr.mxu0 0.0
    %422 = vmatpush1.msra.mxu0 %v135
    %423 = vmatprep.subr.mxu0 0.0
    %424 = vmatpush1.msra.mxu0 %v136
    %425 = vmatprep.subr.mxu0 0.0
    %426 = vmatpush1.msra.mxu0 %v137
    %427 = vmatprep.subr.mxu0 0.0
    %428 = vmatpush1.msra.mxu0 %v138
    %429 = vmatprep.subr.mxu0 0.0
    %430 = vmatpush1.msra.mxu0 %v139
    %431 = vmatprep.subr.mxu0 0.0
    %432 = vmatpush1.msra.mxu0 %v140
    %433 = vmatprep.subr.mxu0 0.0
    %434 = vmatpush1.msra.mxu0 %v141
    %435 = vmatprep.subr.mxu0 0.0
    %436 = vmatpush1.msra.mxu0 %v142
    %437 = vmatprep.subr.mxu0 0.0
    %438 = vmatpush1.msra.mxu0 %v143
    %439 = vmatprep.subr.mxu0 0.0
    %440 = vmatpush1.msra.mxu0 %v144
    %441 = vmatprep.subr.mxu0 0.0
    %442 = vmatpush1.msra.mxu0 %v145
    %443 = vmatprep.subr.mxu0 0.0
    %444 = vmatpush1.msra.mxu0 %v146
    %445 = vmatprep.subr.mxu0 0.0
    %446 = vmatpush1.msra.mxu0 %v147
    %447 = vmatprep.subr.mxu0 0.0
    %448 = vmatpush1.msra.mxu0 %v148
    %449 = vmatprep.subr.mxu0 0.0
    %450 = vmatpush1.msra.mxu0 %v149
    %451 = vmatprep.subr.mxu0 0.0
    %452 = vmatpush1.msra.mxu0 %v150
    %453 = vmatprep.subr.mxu0 0.0
    %454 = vmatpush1.msra.mxu0 %v151
    %455 = vmatprep.subr.mxu0 0.0
    %456 = vmatpush1.msra.mxu0 %v152
    %457 = vmatprep.subr.mxu0 0.0
    %458 = vmatpush1.msra.mxu0 %v153
    %459 = vmatprep.subr.mxu0 0.0
    %460 = vmatpush1.msra.mxu0 %v154
    %461 = vmatprep.subr.mxu0 0.0
    %462 = vmatpush1.msra.mxu0 %v155
    %463 = vmatprep.subr.mxu0 0.0
    %464 = vmatpush1.msra.mxu0 %v156
    %465 = vmatprep.subr.mxu0 0.0
    %466 = vmatpush1.msra.mxu0 %v157
    %467 = vmatprep.subr.mxu0 0.0
    %468 = vmatpush1.msra.mxu0 %v158
    %469 = vmatprep.subr.mxu0 0.0
    %470 = vmatpush1.msra.mxu0 %v159
    %471 = vmatprep.subr.mxu0 0.0
    %472 = vmatpush1.msra.mxu0 %v160
    %473 = vmatprep.subr.mxu0 0.0
    %474 = vmatpush1.msra.mxu0 %v161
    %475 = vmatprep.subr.mxu0 0.0
    %476 = vmatpush1.msra.mxu0 %v162
    %477 = vmatprep.subr.mxu0 0.0
    %478 = vmatpush1.msra.mxu0 %v163
    %479 = vmatprep.subr.mxu0 0.0
    %480 = vmatpush1.msra.mxu0 %v164
    %481 = vmatprep.subr.mxu0 0.0
    %482 = vmatpush1.msra.mxu0 %v165
    %483 = vmatprep.subr.mxu0 0.0
    %484 = vmatpush1.msra.mxu0 %v166
    %485 = vmatprep.mubr.f32.mxu0 %v202
    %486 = vmatmul.mubr.f32.gmra.mrb[0].mxu0 %v200
    %v487 = vpop.f32.mrb[0].mxu0
    %v488 = vadd.f32 %v418, %v487
    %v489 = vpop.f32.mrb[0].mxu0
    %490 = vdwg.mxu0
    %v491 = vadd.f32 %v36, %v488
    %492 = vst [vmem:[#allocation2] sm:$0x3] %v491
    // Predicated region
    $region30: #{classification_net_forward.1} parent=1 // pred_check
      %p493 = pneg %p31
    $region31: #{classification_net_forward.1} parent=1 // pred_check_branch
      %495 = sbr.rel (%p493) target = $region33
    $region32: #{classification_net_forward.1} parent=1 // pred_region
      %v496 = vld [vmem:[#allocation2] sm:$0x3]
      %v497 = vld [vmem:[%s3] sm:$0x1]
      %v499 = vlaneseq
      %v500 = vshrl.u32 %v499, 7
      %v501 = vsub.s32 0, %v500
      %v502 = vrot.slane %v497, %v501
      %v504 = vadd.f32 %v496, %v502
      %s505 = sld [smem:[#allocation4 + $0x2]]
      %vm506 = vcmp.ge.f32.partialorder %v504, 0.0
      %v507 = vstv %s505
      %v508 = vmul.f32 %v507, %v504
      %v509 = vsel %vm506, %v504, %v508
      %v510 = vld [vmem:[%s4] sm:$0x1]
      %v511 = vlaneseq
      %v512 = vshrl.u32 %v511, 7
      %v513 = vsub.s32 0, %v512
      %v514 = vrot.slane %v510, %v513
      %v515 = vmul.f32 %v509, %v514
      %vm516 = vcmask 1041408
      %v517 = vsel %vm516, %v515, 0.0
      %518 = vadd.xlane.f32.xlu0 %v517
      %v519 = vpop.xlane.xlu0 %518
      %s520 = sld [smem:[#allocation4]]
      %v521 = vstv %s520
      %v522 = vadd.f32 %v519, %v521
      %v523 = vld [vmem:[%s4 + $0x1] sm:$0x1]
      %v524 = vlaneseq
      %v525 = vshrl.u32 %v524, 7
      %v526 = vsub.s32 0, %v525
      %v527 = vrot.slane %v523, %v526
      %v528 = vmul.f32 %v509, %v527
      %v529 = vsel %vm516, %v528, 0.0
      %530 = vadd.xlane.f32.xlu0 %v529
      %v531 = vpop.xlane.xlu0 %530
      %s532 = sld [smem:[#allocation4 + $0x1]]
      %v533 = vstv %s532
      %v534 = vadd.f32 %v531, %v533
      %s535 = sld [smem:[#allocation4 + $0x3]]
      %vm536 = vcmp.ge.f32.partialorder %v522, 0.0
      %v537 = vstv %s535
      %v538 = vmul.f32 %v537, %v522
      %v539 = vsel %vm536, %v522, %v538
      %vm540 = vcmp.ge.f32.partialorder %v534, 0.0
      %v541 = vmul.f32 %v537, %v534
      %v542 = vsel %vm540, %v534, %v541
      %v543 = vld [vmem:[%s5] sm:$0x1]
      %v544 = vlaneseq
      %v545 = vshrl.u32 %v544, 7
      %v546 = vsub.s32 0, %v545
      %v547 = vrot.slane %v543, %v546
      %v548 = vmul.f32 %v539, %v547
      %v549 = vld [vmem:[%s5 + $0x1] sm:$0x1]
      %v550 = vlaneseq
      %v551 = vshrl.u32 %v550, 7
      %v552 = vsub.s32 0, %v551
      %v553 = vrot.slane %v549, %v552
      %v554 = vmul.f32 %v542, %v553
      %v555 = vadd.f32 %v548, %v554
      %v556 = vld [vmem:[%s6] sm:$0x1]
      %v558 = vlaneseq
      %v559 = vshrl.u32 %v558, 7
      %v560 = vsub.s32 0, %v559
      %v561 = vrot.slane %v556, %v560
      %v563 = vadd.f32 %v555, %v561
      %v564 = vsel %vm516, %v563, -inf
      %565 = vmax.xlane.f32.xlu0 %v564
      %v566 = vpop.xlane.xlu0 %565
      %v567 = vsub.f32 %v563, %v566
      %v568 = vmul.f32 %v567, 1.442695
      %v569 = vpow.pop %v568
      %v570 = vsel %vm516, %v569, 0.0
      %571 = vadd.xlane.f32.xlu0 %v570
      %v572 = vpop.xlane.xlu0 %571
      %v573 = vlog2.pop %v572
      %v574 = vmul.f32 %v573, 0.6931472
      %v575 = vsub.f32 %v567, %v574
      %576 = vst [vmem:[#allocation5] sm:$0x3] %v575
    $region33: #{classification_net_forward.1} parent=1 // pred_fallthru
      _
    // Predicated region
    $region34: #{classification_net_forward.1} parent=1 // pred_check
      _
    $region35: #{classification_net_forward.1} parent=1 // pred_check_branch
      %578 = sbr.rel (0) target = $region37
    $region36: #{classification_net_forward.1} parent=1 // pred_region
      %s580 = ssub.s32 32, 32
      %581 = vsyncadd [#allocation6], %s580
      %s583 = sshll.u32 [#allocation5], 4
      %s584 = int_to_ptr.vmem [resolvable:$true] %s583
      %586 = dma.vmem_to_hbm [thread:$0]  %s584, 32, %s7, [#allocation6]
    $region37: #{classification_net_forward.1} parent=1 // pred_fallthru
      _
    // Predicated region
    $region38: #{classification_net_forward.1} parent=1 // pred_check
      _
    $region39: #{classification_net_forward.1} parent=1 // pred_check_branch
      %588 = sbr.rel (0) target = $region41
    $region40: #{classification_net_forward.1} parent=1 // pred_region
      %589 = dma.done [#allocation6], 32
    $region41: #{classification_net_forward.1} parent=1 // pred_fallthru
      _
    %590 = vsyncpa [#allocation6], 1

</llo_original>
